<compile_context>
chip_gen: v5e
topology: v5e:2x2
jax: 0.10.0
libtpu: 0.0.40
codegen_flags: <defaults>
</compile_context>

<pallas_src>
import jax
import jax.numpy as jnp
from jax.experimental import pallas as pl
from jax.experimental.pallas import tpu as pltpu


def _round_up(v, m):
    return ((v + m - 1) // m) * m


def _round_down(v, m):
    return (v // m) * m


def _tpu_generation_info():
    """Returns (generation, scoped_vmem_default, physical_vmem, num_tensorcores)."""
    kind = ""
    try:
        kind = jax.devices()[0].device_kind.lower()
    except Exception:
        pass
    if "v5e" in kind or "v5 lite" in kind or "v5lite" in kind:
        return "v5e", 16 << 20, 128 << 20, 1
    if "v6" in kind:
        return "v6e", 32 << 20, 128 << 20, 1
    if "v7" in kind or "7x" in kind:
        return "v7x", 32 << 20, 64 << 20, 2
    # Unknown chip: conservative scoped default / physical cap; assume a
    # megacore so we never strand a TensorCore.
    return "unknown", 16 << 20, 64 << 20, 2


def _make_kernel(compute_dtype, epilogue_dtype):
    def kernel(x_ref, w1_ref, b1_ref, w2_ref, b2_ref, o_ref):
        # Cast x in-VMEM (no wrapper-side astype => no extra HBM pass over x).
        x = x_ref[...].astype(compute_dtype)
        # fc1 on the MXU, f32 accumulation.
        h = jnp.dot(x, w1_ref[...], preferred_element_type=jnp.float32)
        # Bias + ReLU epilogue.  f32 on v5e (no bf16 VPU); bf16 on v6e/v7x when
        # streaming bf16 anyway (halves the h intermediate, drops one cast).
        h = h.astype(epilogue_dtype) + b1_ref[...].astype(epilogue_dtype)
        h = jnp.maximum(h, 0.0)
        # fc2 on the MXU, f32 accumulation.
        y = jnp.dot(h.astype(compute_dtype), w2_ref[...],
                    preferred_element_type=jnp.float32)
        y = y + b2_ref[...]
        o_ref[...] = y.astype(o_ref.dtype)
    return kernel


def prepare_params(w1, b1, w2, b2, *, compute_dtype=None):
    """Cast / pad parameters ONCE (call at init, not per forward).

    compute_dtype=None keeps the PyTorch-faithful f32 path.  Passing
    jnp.bfloat16 opts into bf16 weight/activation streaming with f32 MXU
    accumulation: ~2x less weight DMA, MXU-native, but numerics diverge
    slightly from the f32 nn.Module (error grows ~sqrt(K)).
    """
    D_in, H = w1.shape
    D_out = w2.shape[1]
    cdt = jnp.dtype(compute_dtype) if compute_dtype is not None else jnp.dtype(w1.dtype)

    # Lane-dense guard: pad the output dim to a multiple of 128 so stores are
    # unmasked `vst` (no-op for the module defaults where output_dim=2048).
    D_out_p = _round_up(D_out, 128)
    if D_out_p != D_out:
        w2 = jnp.pad(w2, ((0, 0), (0, D_out_p - D_out)))
        b2 = jnp.pad(b2, ((0, D_out_p - D_out),))

    return dict(
        w1=w1.astype(cdt),
        b1=b1.reshape(1, H).astype(jnp.float32),
        w2=w2.astype(cdt),
        b2=b2.reshape(1, D_out_p).astype(jnp.float32),
        d_out=D_out,
        compute_dtype=cdt,
    )


def fingerprint_nn(x, params, *, tb=None, out_dtype=None, keep_padded_output=False):
    """Fused fc1 -> ReLU -> fc2.  x: (B, D_in) -> (B, D_out)."""
    B, D_in = x.shape
    w1, b1, w2, b2 = params["w1"], params["b1"], params["w2"], params["b2"]
    H = w1.shape[1]
    D_out_p = w2.shape[1]
    D_out = params["d_out"]
    cdt = params["compute_dtype"]
    out_dtype = jnp.dtype(out_dtype) if out_dtype is not None else x.dtype

    gen, scoped_default, physical_vmem, num_tc = _tpu_generation_info()

    x_bytes = jnp.dtype(x.dtype).itemsize
    c_bytes = jnp.dtype(cdt).itemsize
    o_bytes = jnp.dtype(out_dtype).itemsize

    def vmem_needed(rows, w_bufs):
        weights = (D_in * H + H * D_out_p) * c_bytes * w_bufs
        biases = (H + D_out_p) * 4 * w_bufs
        per_row = (
            2 * D_in * x_bytes                              # x tile, double-buffered
            + 2 * D_out_p * o_bytes                         # out tile, double-buffered
            + (D_in * c_bytes if cdt != jnp.dtype(x.dtype) else 0)  # in-kernel x cast
            + H * 4 + H * c_bytes                           # f32 fc1 acc + compute copy of h
            + D_out_p * 4                                   # f32 fc2 acc before store cast
        )
        return weights + biases + rows * per_row

    # ---- batch tile selection (generation-aware) ---------------------------
    tile_budget = (physical_vmem * 3) // 4                  # headroom for compiler
    fixed = vmem_needed(0, 1)
    per_row = vmem_needed(1, 1) - fixed
    if tile_budget > fixed:
        max_rows = max(8, _round_down((tile_budget - fixed) // per_row, 8))
    else:
        max_rows = 8

    if tb is None:
        target = max(8, min(1024, max_rows))                # amortize ~0.35 us/step
        if num_tc > 1 and B >= 512:
            # Keep >= num_tc grid steps so every TensorCore gets work (v7x).
            target = min(target, _round_up(pl.cdiv(B, num_tc), 8))
        if B <= target:
            tb = B
        else:
            tb = _round_down(target, 8)
            cand = tb
            # Prefer an exact divisor of B (no batch padding => no extra HBM
            # pass over x); give up below 256 rows and pad instead.
            while cand >= 256:
                if B % cand == 0:
                    tb = cand
                    break
                cand -= 8
    else:
        tb = min(tb, B)
        if tb < B:
            tb = max(8, _round_down(tb, 8))

    grid_b = pl.cdiv(B, tb)
    Bp = grid_b * tb
    x_in = x
    if Bp != B:
        # Awkward batch: pad rows (one extra pass over x) instead of collapsing
        # to a single giant, non-pipelined step.
        x_in = jnp.pad(x, ((0, Bp - B), (0, 0)))

    # bf16 epilogue only where the VPU is bf16-native; f32 otherwise.
    epilogue_dtype = (cdt if (cdt == jnp.dtype(jnp.bfloat16) and gen in ("v6e", "v7x"))
                      else jnp.float32)
    kernel = _make_kernel(cdt, epilogue_dtype)

    # Advisory cost hint for XLA's scheduler (this op is DMA/launch bound).
    cost = pl.CostEstimate(
        flops=2 * Bp * D_in * H + 2 * Bp * H * D_out_p,
        transcendentals=0,
        bytes_accessed=(Bp * D_in * x_bytes
                        + (D_in * H + H * D_out_p) * c_bytes
                        + (H + D_out_p) * 4
                        + Bp * D_out_p * o_bytes),
    )

    def build(single_buffer_weights):
        const_kw = {}
        if single_buffer_weights:
            # Constant-index blocks: double-buffering buys zero overlap.
            const_kw["pipeline_mode"] = pl.Buffered(1)
        needed = vmem_needed(tb, 1 if single_buffer_weights else 2)
        vmem_limit = None
        if needed > scoped_default:                          # 16 MiB v5e / 32 MiB v6e-v7x
            vmem_limit = min(needed * 5 // 4, physical_vmem) # 128 MiB v5e/v6e, 64 MiB v7x
        return pl.pallas_call(
            kernel,
            out_shape=jax.ShapeDtypeStruct((Bp, D_out_p), out_dtype),
            grid=(grid_b,),
            in_specs=[
                pl.BlockSpec((tb, D_in), lambda i: (i, 0)),                    # x tile
                pl.BlockSpec((D_in, H), lambda i: (0, 0), **const_kw),         # w1 resident
                pl.BlockSpec((1, H), lambda i: (0, 0), **const_kw),            # b1
                pl.BlockSpec((H, D_out_p), lambda i: (0, 0), **const_kw),      # w2 resident
                pl.BlockSpec((1, D_out_p), lambda i: (0, 0), **const_kw),      # b2
            ],
            out_specs=pl.BlockSpec((tb, D_out_p), lambda i: (i, 0)),
            compiler_params=pltpu.CompilerParams(
                dimension_semantics=("parallel",),
                vmem_limit_bytes=vmem_limit,
            ),
            cost_estimate=cost,
        )

    try:
        out = build(True)(x_in, w1, b1, w2, b2)
    except Exception:
        # Portability guard: fall back to default double-buffered weight blocks
        # if this Pallas version rejects pipeline_mode=pl.Buffered(1).
        out = build(False)(x_in, w1, b1, w2, b2)

    if Bp != B:
        out = out[:B]
    if D_out_p != D_out and not keep_padded_output:
        out = out[:, :D_out]
    return out


def init_params(key, input_dim, hidden_dim, output_dim, dtype=jnp.float32):
    """Deterministic init mimicking nn.Linear's U(-1/sqrt(fan_in), 1/sqrt(fan_in))."""
    k1, k2, k3, k4 = jax.random.split(key, 4)
    bound1 = 1.0 / (input_dim ** 0.5)
    bound2 = 1.0 / (hidden_dim ** 0.5)
    # Stored as (in, out) = transpose of PyTorch's (out, in) weight.
    w1 = jax.random.uniform(k1, (input_dim, hidden_dim), dtype, -bound1, bound1)
    b1 = jax.random.uniform(k2, (hidden_dim,), dtype, -bound1, bound1)
    w2 = jax.random.uniform(k3, (hidden_dim, output_dim), dtype, -bound2, bound2)
    b2 = jax.random.uniform(k4, (output_dim,), dtype, -bound2, bound2)
    return w1, b1, w2, b2


if __name__ == "__main__":
    # Small shapes consistent with the module (scaled-down fingerprint MLP).
    batch, input_dim, hidden_dim, output_dim = 8, 256, 128, 256

    key = jax.random.PRNGKey(0)
    kx, kp = jax.random.split(key)
    x = jax.random.normal(kx, (batch, input_dim), jnp.float32)
    w1, b1, w2, b2 = init_params(kp, input_dim, hidden_dim, output_dim)

    # High-precision reference matching the PyTorch module semantics.
    def ref_fn(xv):
        h = jnp.maximum(
            jnp.dot(xv, w1, precision=jax.lax.Precision.HIGHEST) + b1, 0.0)
        return jnp.dot(h, w2, precision=jax.lax.Precision.HIGHEST) + b2

    # 1) Default PyTorch-faithful f32 path (weights prepared once at init).
    params_f32 = prepare_params(w1, b1, w2, b2)
    out = jax.block_until_ready(fingerprint_nn(x, params_f32))
    assert out.shape == (batch, output_dim)
    assert jnp.allclose(out, ref_fn(x), atol=2e-2, rtol=2e-2)

    # 2) Fast path: bf16-streamed weights/activations (cached once), larger
    #    batch with a multi-step grid, bf16 output stream.
    params_bf16 = prepare_params(w1, b1, w2, b2, compute_dtype=jnp.bfloat16)
    big_batch = 2048
    xb = jax.random.normal(kx, (big_batch, input_dim), jnp.float32)
    out_big = jax.block_until_ready(
        fingerprint_nn(xb, params_bf16, tb=512, out_dtype=jnp.bfloat16))
    assert out_big.shape == (big_batch, output_dim)
    assert out_big.dtype == jnp.dtype(jnp.bfloat16)
    assert jnp.allclose(out_big.astype(jnp.float32), ref_fn(xb),
                        atol=5e-2, rtol=5e-2)

    print("KERNEL_OK")
</pallas_src>

<mosaic_0001>
module attributes {stable_mosaic.version = 11 : i64} {
  func.func @kernel(%arg0: i32, %arg1: memref<8x256xf32, #tpu.memory_space<vmem>>, %arg2: memref<256x128xf32, #tpu.memory_space<vmem>>, %arg3: memref<1x128xf32, #tpu.memory_space<vmem>>, %arg4: memref<128x256xf32, #tpu.memory_space<vmem>>, %arg5: memref<1x256xf32, #tpu.memory_space<vmem>>, %arg6: memref<8x256xf32, #tpu.memory_space<vmem>>) attributes {dimension_semantics = [#tpu.dimension_semantics<parallel>], iteration_bounds = array<i64: 1>, scalar_prefetch = 0 : i64, scratch_operands = 0 : i64, tpu.core_type = #tpu.core_type<tc>, window_params = [{transform_indices = @transform_0, window_bounds = array<i64: 8, 256>}, {pipeline_mode = #tpu.pipeline_mode<synchronous>, transform_indices = @transform_1, window_bounds = array<i64: 256, 128>}, {pipeline_mode = #tpu.pipeline_mode<synchronous>, transform_indices = @transform_2, window_bounds = array<i64: 1, 128>}, {pipeline_mode = #tpu.pipeline_mode<synchronous>, transform_indices = @transform_3, window_bounds = array<i64: 128, 256>}, {pipeline_mode = #tpu.pipeline_mode<synchronous>, transform_indices = @transform_4, window_bounds = array<i64: 1, 256>}, {transform_indices = @transform_5, window_bounds = array<i64: 8, 256>}]} {
    %c0 = arith.constant 0 : index
    %c0_0 = arith.constant 0 : index
    %0 = vector.load %arg1[%c0, %c0_0] : memref<8x256xf32, #tpu.memory_space<vmem>>, vector<8x256xf32>
    %c0_1 = arith.constant 0 : index
    %c0_2 = arith.constant 0 : index
    %1 = vector.load %arg2[%c0_1, %c0_2] : memref<256x128xf32, #tpu.memory_space<vmem>>, vector<256x128xf32>
    %cst = arith.constant dense<0.000000e+00> : vector<8x128xf32>
    %2 = tpu.matmul %0, %1, %cst {dimension_numbers = #tpu.dot_dimension_numbers<[1], [0], [0], [1], [0, 0, 1, 1], [], []>} : vector<8x256xf32>, vector<256x128xf32>, vector<8x128xf32> -> vector<8x128xf32>
    %c0_3 = arith.constant 0 : index
    %c0_4 = arith.constant 0 : index
    %3 = vector.load %arg3[%c0_3, %c0_4] : memref<1x128xf32, #tpu.memory_space<vmem>>, vector<1x128xf32>
    %4 = vector.broadcast %3 : vector<1x128xf32> to vector<8x128xf32>
    %5 = arith.addf %2, %4 : vector<8x128xf32>
    %cst_5 = arith.constant 0.000000e+00 : f32
    %6 = vector.broadcast %cst_5 : f32 to vector<8x128xf32>
    %7 = arith.maximumf %5, %6 : vector<8x128xf32>
    %c0_6 = arith.constant 0 : index
    %c0_7 = arith.constant 0 : index
    %8 = vector.load %arg4[%c0_6, %c0_7] : memref<128x256xf32, #tpu.memory_space<vmem>>, vector<128x256xf32>
    %cst_8 = arith.constant dense<0.000000e+00> : vector<8x256xf32>
    %9 = tpu.matmul %7, %8, %cst_8 {dimension_numbers = #tpu.dot_dimension_numbers<[1], [0], [0], [1], [0, 0, 1, 1], [], []>} : vector<8x128xf32>, vector<128x256xf32>, vector<8x256xf32> -> vector<8x256xf32>
    %c0_9 = arith.constant 0 : index
    %c0_10 = arith.constant 0 : index
    %10 = vector.load %arg5[%c0_9, %c0_10] : memref<1x256xf32, #tpu.memory_space<vmem>>, vector<1x256xf32>
    %11 = vector.broadcast %10 : vector<1x256xf32> to vector<8x256xf32>
    %12 = arith.addf %9, %11 : vector<8x256xf32>
    %c0_11 = arith.constant 0 : index
    %c0_12 = arith.constant 0 : index
    %13 = vector.load %arg6[%c0_11, %c0_12] : memref<8x256xf32, #tpu.memory_space<vmem>>, vector<8x256xf32>
    tpu.vector_store %arg6[%c0_11, %c0_12], %12 {strides = array<i32>} : memref<8x256xf32, #tpu.memory_space<vmem>>, vector<8x256xf32>,
    return
  }
  func.func @transform_0(%arg0: i32) -> (i32, i32) {
    %c0_i32 = arith.constant 0 : i32
    %c0_i32_0 = arith.constant 0 : i32
    return %arg0, %c0_i32 : i32, i32
  }
  func.func @transform_1(%arg0: i32) -> (i32, i32) {
    %c0_i32 = arith.constant 0 : i32
    %c0_i32_0 = arith.constant 0 : i32
    %c0_i32_1 = arith.constant 0 : i32
    return %c0_i32, %c0_i32_0 : i32, i32
  }
  func.func @transform_2(%arg0: i32) -> (i32, i32) {
    %c0_i32 = arith.constant 0 : i32
    %c0_i32_0 = arith.constant 0 : i32
    %c0_i32_1 = arith.constant 0 : i32
    return %c0_i32, %c0_i32_0 : i32, i32
  }
  func.func @transform_3(%arg0: i32) -> (i32, i32) {
    %c0_i32 = arith.constant 0 : i32
    %c0_i32_0 = arith.constant 0 : i32
    %c0_i32_1 = arith.constant 0 : i32
    return %c0_i32, %c0_i32_0 : i32, i32
  }
  func.func @transform_4(%arg0: i32) -> (i32, i32) {
    %c0_i32 = arith.constant 0 : i32
    %c0_i32_0 = arith.constant 0 : i32
    %c0_i32_1 = arith.constant 0 : i32
    return %c0_i32, %c0_i32_0 : i32, i32
  }
  func.func @transform_5(%arg0: i32) -> (i32, i32) {
    %c0_i32 = arith.constant 0 : i32
    %c0_i32_0 = arith.constant 0 : i32
    return %arg0, %c0_i32 : i32, i32
  }
}

module attributes {stable_mosaic.version = 11 : i64} {
  func.func @kernel(%arg0: i32, %arg1: memref<8x256xf32, #tpu.memory_space<vmem>>, %arg2: memref<256x128xf32, #tpu.memory_space<vmem>>, %arg3: memref<1x128xf32, #tpu.memory_space<vmem>>, %arg4: memref<128x256xf32, #tpu.memory_space<vmem>>, %arg5: memref<1x256xf32, #tpu.memory_space<vmem>>, %arg6: memref<8x256xf32, #tpu.memory_space<vmem>>) attributes {dimension_semantics = [#tpu.dimension_semantics<parallel>], iteration_bounds = array<i64: 1>, scalar_prefetch = 0 : i64, scratch_operands = 0 : i64, tpu.core_type = #tpu.core_type<tc>, window_params = [{transform_indices = @transform_0, window_bounds = array<i64: 8, 256>}, {pipeline_mode = #tpu.pipeline_mode<synchronous>, transform_indices = @transform_1, window_bounds = array<i64: 256, 128>}, {pipeline_mode = #tpu.pipeline_mode<synchronous>, transform_indices = @transform_2, window_bounds = array<i64: 1, 128>}, {pipeline_mode = #tpu.pipeline_mode<synchronous>, transform_indices = @transform_3, window_bounds = array<i64: 128, 256>}, {pipeline_mode = #tpu.pipeline_mode<synchronous>, transform_indices = @transform_4, window_bounds = array<i64: 1, 256>}, {transform_indices = @transform_5, window_bounds = array<i64: 8, 256>}]} {
    %c0 = arith.constant 0 : index
    %c0_0 = arith.constant 0 : index
    %0 = vector.load %arg1[%c0, %c0_0] : memref<8x256xf32, #tpu.memory_space<vmem>>, vector<8x256xf32>
    %c0_1 = arith.constant 0 : index
    %c0_2 = arith.constant 0 : index
    %1 = vector.load %arg2[%c0_1, %c0_2] : memref<256x128xf32, #tpu.memory_space<vmem>>, vector<256x128xf32>
    %cst = arith.constant dense<0.000000e+00> : vector<8x128xf32>
    %2 = tpu.matmul %0, %1, %cst {dimension_numbers = #tpu.dot_dimension_numbers<[1], [0], [0], [1], [0, 0, 1, 1], [], []>} : vector<8x256xf32>, vector<256x128xf32>, vector<8x128xf32> -> vector<8x128xf32>
    %c0_3 = arith.constant 0 : index
    %c0_4 = arith.constant 0 : index
    %3 = vector.load %arg3[%c0_3, %c0_4] : memref<1x128xf32, #tpu.memory_space<vmem>>, vector<1x128xf32>
    %4 = vector.broadcast %3 : vector<1x128xf32> to vector<8x128xf32>
    %5 = arith.addf %2, %4 : vector<8x128xf32>
    %cst_5 = arith.constant 0.000000e+00 : f32
    %6 = vector.broadcast %cst_5 : f32 to vector<8x128xf32>
    %7 = arith.maximumf %5, %6 : vector<8x128xf32>
    %c0_6 = arith.constant 0 : index
    %c0_7 = arith.constant 0 : index
    %8 = vector.load %arg4[%c0_6, %c0_7] : memref<128x256xf32, #tpu.memory_space<vmem>>, vector<128x256xf32>
    %cst_8 = arith.constant dense<0.000000e+00> : vector<8x256xf32>
    %9 = tpu.matmul %7, %8, %cst_8 {dimension_numbers = #tpu.dot_dimension_numbers<[1], [0], [0], [1], [0, 0, 1, 1], [], []>} : vector<8x128xf32>, vector<128x256xf32>, vector<8x256xf32> -> vector<8x256xf32>
    %c0_9 = arith.constant 0 : index
    %c0_10 = arith.constant 0 : index
    %10 = vector.load %arg5[%c0_9, %c0_10] : memref<1x256xf32, #tpu.memory_space<vmem>>, vector<1x256xf32>
    %11 = vector.broadcast %10 : vector<1x256xf32> to vector<8x256xf32>
    %12 = arith.addf %9, %11 : vector<8x256xf32>
    %c0_11 = arith.constant 0 : index
    %c0_12 = arith.constant 0 : index
    %13 = vector.load %arg6[%c0_11, %c0_12] : memref<8x256xf32, #tpu.memory_space<vmem>>, vector<8x256xf32>
    tpu.vector_store %arg6[%c0_11, %c0_12], %12 {strides = array<i32>} : memref<8x256xf32, #tpu.memory_space<vmem>>, vector<8x256xf32>,
    return
  }
  func.func @transform_0(%arg0: i32) -> (i32, i32) {
    %c0_i32 = arith.constant 0 : i32
    %c0_i32_0 = arith.constant 0 : i32
    return %arg0, %c0_i32 : i32, i32
  }
  func.func @transform_1(%arg0: i32) -> (i32, i32) {
    %c0_i32 = arith.constant 0 : i32
    %c0_i32_0 = arith.constant 0 : i32
    %c0_i32_1 = arith.constant 0 : i32
    return %c0_i32, %c0_i32_0 : i32, i32
  }
  func.func @transform_2(%arg0: i32) -> (i32, i32) {
    %c0_i32 = arith.constant 0 : i32
    %c0_i32_0 = arith.constant 0 : i32
    %c0_i32_1 = arith.constant 0 : i32
    return %c0_i32, %c0_i32_0 : i32, i32
  }
  func.func @transform_3(%arg0: i32) -> (i32, i32) {
    %c0_i32 = arith.constant 0 : i32
    %c0_i32_0 = arith.constant 0 : i32
    %c0_i32_1 = arith.constant 0 : i32
    return %c0_i32, %c0_i32_0 : i32, i32
  }
  func.func @transform_4(%arg0: i32) -> (i32, i32) {
    %c0_i32 = arith.constant 0 : i32
    %c0_i32_0 = arith.constant 0 : i32
    %c0_i32_1 = arith.constant 0 : i32
    return %c0_i32, %c0_i32_0 : i32, i32
  }
  func.func @transform_5(%arg0: i32) -> (i32, i32) {
    %c0_i32 = arith.constant 0 : i32
    %c0_i32_0 = arith.constant 0 : i32
    return %arg0, %c0_i32 : i32, i32
  }
}

</mosaic_0001>

<llo_original>
// kernel: tpu_custom_call.1
$region0: #{tpu_custom_call.1}
  #allocation0 [shape = 'u32[]', space=smem, size = 0x4, offset = 0x4, fixed_abs, tag = 'smem constant byte address 0x4 - core index']
  #allocation1 [shape = 'u32[72,128]{1,0:T(1,128)}', space=vmem, size = 0x9000, scoped, tag = 'internal scratch']
  %s0 = inlined_call_operand.hbm [shape: f32[8,256], index: 0, kind: input, shape index: {}]
  %s1 = inlined_call_operand.hbm [shape: f32[256,128], index: 1, kind: input, shape index: {}]
  %s2 = inlined_call_operand.vmem [shape: f32[1,128], index: 2, kind: input, shape index: {}]
  %s3 = inlined_call_operand.hbm [shape: f32[128,256], index: 3, kind: input, shape index: {}]
  %s4 = inlined_call_operand.vmem [shape: f32[1,256], index: 4, kind: input, shape index: {}]
  %s5 = inlined_call_operand.hbm [shape: f32[8,256], index: 5, kind: output, shape index: {}]
  %s6 = sld [smem:[#allocation0]]
  $region42: #{tpu_custom_call.1} parent=0
    _
  %s8 = ssub.s32 1, %s6
  %s9 = scalar_select 0, %s8, %s6
  $region1: #{tpu_custom_call.1} parent=0
    #allocation2 [shape = 'u8[8192]{0}', space=vmem, size = 0x2000, scoped, tag = 'input window, operand 0, single buffered']
    #allocation3 [shape = 's32[1]{0}', space=sflag, size = 0x4, scoped, tag = 'scoped memory for tpu_custom_call.1']
    #allocation4 [shape = 's32[1]{0}', space=sflag, size = 0x4, scoped, tag = 'scoped memory for tpu_custom_call.1']
    #allocation5 [shape = 'u8[131072]{0}', space=vmem, size = 0x20000, scoped, tag = 'input window, operand 1, single buffered']
    #allocation6 [shape = 's32[1]{0}', space=sflag, size = 0x4, scoped, tag = 'scoped memory for tpu_custom_call.1']
    #allocation7 [shape = 'u8[131072]{0}', space=vmem, size = 0x20000, scoped, tag = 'input window, operand 3, single buffered']
    #allocation8 [shape = 'u8[8192]{0}', space=vmem, size = 0x2000, scoped, tag = 'output window, operand 0, single buffered']
    %10 = vsyncpa [#allocation3], 0
    %11 = vsyncpa [#allocation6], 0
    %12 = vsyncpa [#allocation4], 0
    // Predicated region
    $region2: #{tpu_custom_call.1} parent=1 // pred_check
      _
    $region3: #{tpu_custom_call.1} parent=1 // pred_check_branch
      %14 = sbr.rel (0) target = $region5
    $region4: #{tpu_custom_call.1} parent=1 // pred_region
      %16 = vsyncadd [#allocation3], 0
      %s18 = sshll.u32 %s0, 4
      %s19 = int_to_ptr.hbm [resolvable:$true] %s18
      %s20 = sshll.u32 [#allocation2], 4
      %s21 = int_to_ptr.vmem [resolvable:$true] %s20
      %23 = dma.hbm_to_vmem [thread:$0]  %s19, 256, %s21, [#allocation3]
    $region5: #{tpu_custom_call.1} parent=1 // pred_fallthru
      _
    // Predicated region
    $region6: #{tpu_custom_call.1} parent=1 // pred_check
      _
    $region7: #{tpu_custom_call.1} parent=1 // pred_check_branch
      %25 = sbr.rel (0) target = $region9
    $region8: #{tpu_custom_call.1} parent=1 // pred_region
      %27 = vsyncadd [#allocation6], 0
      %s28 = sshll.u32 %s1, 4
      %s29 = int_to_ptr.hbm [resolvable:$true] %s28
      %s30 = sshll.u32 [#allocation5], 4
      %s31 = int_to_ptr.vmem [resolvable:$true] %s30
      %36 = dma.hbm_to_vmem [thread:$0]  %s29, 4096, %s31, [#allocation6], 128, 128, 8
    $region9: #{tpu_custom_call.1} parent=1 // pred_fallthru
      _
    // Predicated region
    $region10: #{tpu_custom_call.1} parent=1 // pred_check
      _
    $region11: #{tpu_custom_call.1} parent=1 // pred_check_branch
      %38 = sbr.rel (0) target = $region13
    $region12: #{tpu_custom_call.1} parent=1 // pred_region
      _
    $region13: #{tpu_custom_call.1} parent=1 // pred_fallthru
      _
    // Predicated region
    $region14: #{tpu_custom_call.1} parent=1 // pred_check
      _
    $region15: #{tpu_custom_call.1} parent=1 // pred_check_branch
      %40 = sbr.rel (0) target = $region17
    $region16: #{tpu_custom_call.1} parent=1 // pred_region
      %42 = vsyncadd [#allocation6], 0
      %s43 = sshll.u32 %s3, 4
      %s44 = int_to_ptr.hbm [resolvable:$true] %s43
      %s45 = sshll.u32 [#allocation7], 4
      %s46 = int_to_ptr.vmem [resolvable:$true] %s45
      %51 = dma.hbm_to_vmem [thread:$0]  %s44, 4096, %s46, [#allocation6], 256, 256, 16
    $region17: #{tpu_custom_call.1} parent=1 // pred_fallthru
      _
    // Predicated region
    $region18: #{tpu_custom_call.1} parent=1 // pred_check
      _
    $region19: #{tpu_custom_call.1} parent=1 // pred_check_branch
      %53 = sbr.rel (0) target = $region21
    $region20: #{tpu_custom_call.1} parent=1 // pred_region
      _
    $region21: #{tpu_custom_call.1} parent=1 // pred_fallthru
      _
    // Predicated region
    $region22: #{tpu_custom_call.1} parent=1 // pred_check
      _
    $region23: #{tpu_custom_call.1} parent=1 // pred_check_branch
      %55 = sbr.rel (0) target = $region25
    $region24: #{tpu_custom_call.1} parent=1 // pred_region
      %57 = dma.done [#allocation3], 256
    $region25: #{tpu_custom_call.1} parent=1 // pred_fallthru
      _
    // Predicated region
    $region26: #{tpu_custom_call.1} parent=1 // pred_check
      _
    $region27: #{tpu_custom_call.1} parent=1 // pred_check_branch
      %59 = sbr.rel (0) target = $region29
    $region28: #{tpu_custom_call.1} parent=1 // pred_region
      %61 = dma.done [#allocation6], 4096
    $region29: #{tpu_custom_call.1} parent=1 // pred_fallthru
      _
    // Predicated region
    $region30: #{tpu_custom_call.1} parent=1 // pred_check
      _
    $region31: #{tpu_custom_call.1} parent=1 // pred_check_branch
      %63 = sbr.rel (0) target = $region33
    $region32: #{tpu_custom_call.1} parent=1 // pred_region
      %65 = dma.done [#allocation6], 4096
    $region33: #{tpu_custom_call.1} parent=1 // pred_fallthru
      _
    %v66 = vld [vmem:[#allocation2] sm:$0xff]
    %v67 = vld [vmem:[#allocation2 + $0x8] sm:$0xff]
    %v68 = vld [vmem:[#allocation5] sm:$0xff]
    %v69 = vld [vmem:[#allocation5 + $0x8] sm:$0xff]
    %v70 = vld [vmem:[#allocation5 + $0x10] sm:$0xff]
    %v71 = vld [vmem:[#allocation5 + $0x18] sm:$0xff]
    %v72 = vld [vmem:[#allocation5 + $0x20] sm:$0xff]
    %v73 = vld [vmem:[#allocation5 + $0x28] sm:$0xff]
    %v74 = vld [vmem:[#allocation5 + $0x30] sm:$0xff]
    %v75 = vld [vmem:[#allocation5 + $0x38] sm:$0xff]
    %v76 = vld [vmem:[#allocation5 + $0x40] sm:$0xff]
    %v77 = vld [vmem:[#allocation5 + $0x48] sm:$0xff]
    %v78 = vld [vmem:[#allocation5 + $0x50] sm:$0xff]
    %v79 = vld [vmem:[#allocation5 + $0x58] sm:$0xff]
    %v80 = vld [vmem:[#allocation5 + $0x60] sm:$0xff]
    %v81 = vld [vmem:[#allocation5 + $0x68] sm:$0xff]
    %v82 = vld [vmem:[#allocation5 + $0x70] sm:$0xff]
    %v83 = vld [vmem:[#allocation5 + $0x78] sm:$0xff]
    %v84 = vld [vmem:[#allocation5 + $0x80] sm:$0xff]
    %v85 = vld [vmem:[#allocation5 + $0x88] sm:$0xff]
    %v86 = vld [vmem:[#allocation5 + $0x90] sm:$0xff]
    %v87 = vld [vmem:[#allocation5 + $0x98] sm:$0xff]
    %v88 = vld [vmem:[#allocation5 + $0xa0] sm:$0xff]
    %v89 = vld [vmem:[#allocation5 + $0xa8] sm:$0xff]
    %v90 = vld [vmem:[#allocation5 + $0xb0] sm:$0xff]
    %v91 = vld [vmem:[#allocation5 + $0xb8] sm:$0xff]
    %v92 = vld [vmem:[#allocation5 + $0xc0] sm:$0xff]
    %v93 = vld [vmem:[#allocation5 + $0xc8] sm:$0xff]
    %v94 = vld [vmem:[#allocation5 + $0xd0] sm:$0xff]
    %v95 = vld [vmem:[#allocation5 + $0xd8] sm:$0xff]
    %v96 = vld [vmem:[#allocation5 + $0xe0] sm:$0xff]
    %v97 = vld [vmem:[#allocation5 + $0xe8] sm:$0xff]
    %v98 = vld [vmem:[#allocation5 + $0xf0] sm:$0xff]
    %v99 = vld [vmem:[#allocation5 + $0xf8] sm:$0xff]
    %v100 = vld [vmem:[%s2] sm:$0x1]
    %v102 = vperm.slane %v100, 0
    %104 = vmatpush.msra.mxu0 %v83
    %105 = vmatpush.msra.mxu0 %v82
    %106 = vmatpush.msra.mxu0 %v81
    %107 = vmatpush.msra.mxu0 %v80
    %108 = vmatpush.msra.mxu0 %v79
    %109 = vmatpush.msra.mxu0 %v78
    %110 = vmatpush.msra.mxu0 %v77
    %111 = vmatpush.msra.mxu0 %v76
    %112 = vmatpush.msra.mxu0 %v75
    %113 = vmatpush.msra.mxu0 %v74
    %114 = vmatpush.msra.mxu0 %v73
    %115 = vmatpush.msra.mxu0 %v72
    %116 = vmatpush.msra.mxu0 %v71
    %117 = vmatpush.msra.mxu0 %v70
    %118 = vmatpush.msra.mxu0 %v69
    %119 = vmatpush.msra.mxu0 %v68
    %120 = vmatmul.f32.gmra.mxu0 %v66
    %v121 = vpop.f32.mrf.mxu0
    %v122 = vadd.f32 %v102, %v121
    %123 = vdwg.mxu0
    %124 = vmatpush.msra.mxu0 %v99
    %125 = vmatpush.msra.mxu0 %v98
    %126 = vmatpush.msra.mxu0 %v97
    %127 = vmatpush.msra.mxu0 %v96
    %128 = vmatpush.msra.mxu0 %v95
    %129 = vmatpush.msra.mxu0 %v94
    %130 = vmatpush.msra.mxu0 %v93
    %131 = vmatpush.msra.mxu0 %v92
    %132 = vmatpush.msra.mxu0 %v91
    %133 = vmatpush.msra.mxu0 %v90
    %134 = vmatpush.msra.mxu0 %v89
    %135 = vmatpush.msra.mxu0 %v88
    %136 = vmatpush.msra.mxu0 %v87
    %137 = vmatpush.msra.mxu0 %v86
    %138 = vmatpush.msra.mxu0 %v85
    %139 = vmatpush.msra.mxu0 %v84
    %140 = vmatmul.f32.gmra.mxu0 %v67
    %v141 = vpop.f32.mrf.mxu0
    %v142 = vadd.f32 %v122, %v141
    %143 = vdwg.mxu0
    %v144 = vmax.f32 %v142, 0.0
    %v145 = vld [vmem:[#allocation7] sm:$0xff]
    %v146 = vld [vmem:[#allocation7 + $0x8] sm:$0xff]
    %v147 = vld [vmem:[#allocation7 + $0x10] sm:$0xff]
    %v148 = vld [vmem:[#allocation7 + $0x18] sm:$0xff]
    %v149 = vld [vmem:[#allocation7 + $0x20] sm:$0xff]
    %v150 = vld [vmem:[#allocation7 + $0x28] sm:$0xff]
    %v151 = vld [vmem:[#allocation7 + $0x30] sm:$0xff]
    %v152 = vld [vmem:[#allocation7 + $0x38] sm:$0xff]
    %v153 = vld [vmem:[#allocation7 + $0x40] sm:$0xff]
    %v154 = vld [vmem:[#allocation7 + $0x48] sm:$0xff]
    %v155 = vld [vmem:[#allocation7 + $0x50] sm:$0xff]
    %v156 = vld [vmem:[#allocation7 + $0x58] sm:$0xff]
    %v157 = vld [vmem:[#allocation7 + $0x60] sm:$0xff]
    %v158 = vld [vmem:[#allocation7 + $0x68] sm:$0xff]
    %v159 = vld [vmem:[#allocation7 + $0x70] sm:$0xff]
    %v160 = vld [vmem:[#allocation7 + $0x78] sm:$0xff]
    %v161 = vld [vmem:[#allocation7 + $0x80] sm:$0xff]
    %v162 = vld [vmem:[#allocation7 + $0x88] sm:$0xff]
    %v163 = vld [vmem:[#allocation7 + $0x90] sm:$0xff]
    %v164 = vld [vmem:[#allocation7 + $0x98] sm:$0xff]
    %v165 = vld [vmem:[#allocation7 + $0xa0] sm:$0xff]
    %v166 = vld [vmem:[#allocation7 + $0xa8] sm:$0xff]
    %v167 = vld [vmem:[#allocation7 + $0xb0] sm:$0xff]
    %v168 = vld [vmem:[#allocation7 + $0xb8] sm:$0xff]
    %v169 = vld [vmem:[#allocation7 + $0xc0] sm:$0xff]
    %v170 = vld [vmem:[#allocation7 + $0xc8] sm:$0xff]
    %v171 = vld [vmem:[#allocation7 + $0xd0] sm:$0xff]
    %v172 = vld [vmem:[#allocation7 + $0xd8] sm:$0xff]
    %v173 = vld [vmem:[#allocation7 + $0xe0] sm:$0xff]
    %v174 = vld [vmem:[#allocation7 + $0xe8] sm:$0xff]
    %v175 = vld [vmem:[#allocation7 + $0xf0] sm:$0xff]
    %v176 = vld [vmem:[#allocation7 + $0xf8] sm:$0xff]
    %v177 = vld [vmem:[%s4] sm:$0x3]
    %v179 = vperm.slane %v177, 0
    %v180 = vperm.slane %v177, 1
    %183 = vmatpush.msra.mxu0 %v175
    %184 = vmatpush.msra.mxu0 %v173
    %185 = vmatpush.msra.mxu0 %v171
    %186 = vmatpush.msra.mxu0 %v169
    %187 = vmatpush.msra.mxu0 %v167
    %188 = vmatpush.msra.mxu0 %v165
    %189 = vmatpush.msra.mxu0 %v163
    %190 = vmatpush.msra.mxu0 %v161
    %191 = vmatpush.msra.mxu0 %v159
    %192 = vmatpush.msra.mxu0 %v157
    %193 = vmatpush.msra.mxu0 %v155
    %194 = vmatpush.msra.mxu0 %v153
    %195 = vmatpush.msra.mxu0 %v151
    %196 = vmatpush.msra.mxu0 %v149
    %197 = vmatpush.msra.mxu0 %v147
    %198 = vmatpush.msra.mxu0 %v145
    %199 = vmatmul.f32.gmra.mxu0 %v144
    %v200 = vpop.f32.mrf.mxu0
    %v201 = vadd.f32 %v179, %v200
    %202 = vdwg.mxu0
    %203 = vmatpush.msra.mxu0 %v176
    %204 = vmatpush.msra.mxu0 %v174
    %205 = vmatpush.msra.mxu0 %v172
    %206 = vmatpush.msra.mxu0 %v170
    %207 = vmatpush.msra.mxu0 %v168
    %208 = vmatpush.msra.mxu0 %v166
    %209 = vmatpush.msra.mxu0 %v164
    %210 = vmatpush.msra.mxu0 %v162
    %211 = vmatpush.msra.mxu0 %v160
    %212 = vmatpush.msra.mxu0 %v158
    %213 = vmatpush.msra.mxu0 %v156
    %214 = vmatpush.msra.mxu0 %v154
    %215 = vmatpush.msra.mxu0 %v152
    %216 = vmatpush.msra.mxu0 %v150
    %217 = vmatpush.msra.mxu0 %v148
    %218 = vmatpush.msra.mxu0 %v146
    %219 = vmatmul.f32.gmra.mxu0 %v144
    %v220 = vpop.f32.mrf.mxu0
    %v221 = vadd.f32 %v180, %v220
    %222 = vdwg.mxu0
    %223 = vst [vmem:[#allocation8] sm:$0xff] %v201
    %224 = vst [vmem:[#allocation8 + $0x8] sm:$0xff] %v221
    // Predicated region
    $region34: #{tpu_custom_call.1} parent=1 // pred_check
      _
    $region35: #{tpu_custom_call.1} parent=1 // pred_check_branch
      %226 = sbr.rel (0) target = $region37
    $region36: #{tpu_custom_call.1} parent=1 // pred_region
      %228 = vsyncadd [#allocation4], 0
      %s230 = sshll.u32 [#allocation8], 4
      %s231 = int_to_ptr.vmem [resolvable:$true] %s230
      %s232 = sshll.u32 %s5, 4
      %s233 = int_to_ptr.hbm [resolvable:$true] %s232
      %235 = dma.vmem_to_hbm [thread:$0]  %s231, 256, %s233, [#allocation4]
    $region37: #{tpu_custom_call.1} parent=1 // pred_fallthru
      _
    // Predicated region
    $region38: #{tpu_custom_call.1} parent=1 // pred_check
      _
    $region39: #{tpu_custom_call.1} parent=1 // pred_check_branch
      %237 = sbr.rel (0) target = $region41
    $region40: #{tpu_custom_call.1} parent=1 // pred_region
      %239 = dma.done [#allocation4], 256
    $region41: #{tpu_custom_call.1} parent=1 // pred_fallthru
      _
    %240 = vsyncpa [#allocation3], 1
    %241 = vsyncpa [#allocation6], 1
    %242 = vsyncpa [#allocation4], 1

// kernel: tpu_custom_call.1
$region0: #{tpu_custom_call.1}
  #allocation0 [shape = 'u32[]', space=smem, size = 0x4, offset = 0x4, fixed_abs, tag = 'smem constant byte address 0x4 - core index']
  #allocation1 [shape = 'u32[72,128]{1,0:T(1,128)}', space=vmem, size = 0x9000, scoped, tag = 'internal scratch']
  %s0 = inlined_call_operand.hbm [shape: f32[8,256], index: 0, kind: input, shape index: {}]
  %s1 = inlined_call_operand.hbm [shape: f32[256,128], index: 1, kind: input, shape index: {}]
  %s2 = inlined_call_operand.vmem [shape: f32[1,128], index: 2, kind: input, shape index: {}]
  %s3 = inlined_call_operand.hbm [shape: f32[128,256], index: 3, kind: input, shape index: {}]
  %s4 = inlined_call_operand.vmem [shape: f32[1,256], index: 4, kind: input, shape index: {}]
  %s5 = inlined_call_operand.hbm [shape: f32[8,256], index: 5, kind: output, shape index: {}]
  %s6 = sld [smem:[#allocation0]]
  $region42: #{tpu_custom_call.1} parent=0
    _
  %s8 = ssub.s32 1, %s6
  %s9 = scalar_select 0, %s8, %s6
  $region1: #{tpu_custom_call.1} parent=0
    #allocation2 [shape = 'u8[8192]{0}', space=vmem, size = 0x2000, scoped, tag = 'input window, operand 0, single buffered']
    #allocation3 [shape = 's32[1]{0}', space=sflag, size = 0x4, scoped, tag = 'scoped memory for tpu_custom_call.1']
    #allocation4 [shape = 's32[1]{0}', space=sflag, size = 0x4, scoped, tag = 'scoped memory for tpu_custom_call.1']
    #allocation5 [shape = 'u8[131072]{0}', space=vmem, size = 0x20000, scoped, tag = 'input window, operand 1, single buffered']
    #allocation6 [shape = 's32[1]{0}', space=sflag, size = 0x4, scoped, tag = 'scoped memory for tpu_custom_call.1']
    #allocation7 [shape = 'u8[131072]{0}', space=vmem, size = 0x20000, scoped, tag = 'input window, operand 3, single buffered']
    #allocation8 [shape = 'u8[8192]{0}', space=vmem, size = 0x2000, scoped, tag = 'output window, operand 0, single buffered']
    %10 = vsyncpa [#allocation3], 0
    %11 = vsyncpa [#allocation6], 0
    %12 = vsyncpa [#allocation4], 0
    // Predicated region
    $region2: #{tpu_custom_call.1} parent=1 // pred_check
      _
    $region3: #{tpu_custom_call.1} parent=1 // pred_check_branch
      %14 = sbr.rel (0) target = $region5
    $region4: #{tpu_custom_call.1} parent=1 // pred_region
      %16 = vsyncadd [#allocation3], 0
      %s18 = sshll.u32 %s0, 4
      %s19 = int_to_ptr.hbm [resolvable:$true] %s18
      %s20 = sshll.u32 [#allocation2], 4
      %s21 = int_to_ptr.vmem [resolvable:$true] %s20
      %23 = dma.hbm_to_vmem [thread:$0]  %s19, 256, %s21, [#allocation3]
    $region5: #{tpu_custom_call.1} parent=1 // pred_fallthru
      _
    // Predicated region
    $region6: #{tpu_custom_call.1} parent=1 // pred_check
      _
    $region7: #{tpu_custom_call.1} parent=1 // pred_check_branch
      %25 = sbr.rel (0) target = $region9
    $region8: #{tpu_custom_call.1} parent=1 // pred_region
      %27 = vsyncadd [#allocation6], 0
      %s28 = sshll.u32 %s1, 4
      %s29 = int_to_ptr.hbm [resolvable:$true] %s28
      %s30 = sshll.u32 [#allocation5], 4
      %s31 = int_to_ptr.vmem [resolvable:$true] %s30
      %36 = dma.hbm_to_vmem [thread:$0]  %s29, 4096, %s31, [#allocation6], 128, 128, 8
    $region9: #{tpu_custom_call.1} parent=1 // pred_fallthru
      _
    // Predicated region
    $region10: #{tpu_custom_call.1} parent=1 // pred_check
      _
    $region11: #{tpu_custom_call.1} parent=1 // pred_check_branch
      %38 = sbr.rel (0) target = $region13
    $region12: #{tpu_custom_call.1} parent=1 // pred_region
      _
    $region13: #{tpu_custom_call.1} parent=1 // pred_fallthru
      _
    // Predicated region
    $region14: #{tpu_custom_call.1} parent=1 // pred_check
      _
    $region15: #{tpu_custom_call.1} parent=1 // pred_check_branch
      %40 = sbr.rel (0) target = $region17
    $region16: #{tpu_custom_call.1} parent=1 // pred_region
      %42 = vsyncadd [#allocation6], 0
      %s43 = sshll.u32 %s3, 4
      %s44 = int_to_ptr.hbm [resolvable:$true] %s43
      %s45 = sshll.u32 [#allocation7], 4
      %s46 = int_to_ptr.vmem [resolvable:$true] %s45
      %51 = dma.hbm_to_vmem [thread:$0]  %s44, 4096, %s46, [#allocation6], 256, 256, 16
    $region17: #{tpu_custom_call.1} parent=1 // pred_fallthru
      _
    // Predicated region
    $region18: #{tpu_custom_call.1} parent=1 // pred_check
      _
    $region19: #{tpu_custom_call.1} parent=1 // pred_check_branch
      %53 = sbr.rel (0) target = $region21
    $region20: #{tpu_custom_call.1} parent=1 // pred_region
      _
    $region21: #{tpu_custom_call.1} parent=1 // pred_fallthru
      _
    // Predicated region
    $region22: #{tpu_custom_call.1} parent=1 // pred_check
      _
    $region23: #{tpu_custom_call.1} parent=1 // pred_check_branch
      %55 = sbr.rel (0) target = $region25
    $region24: #{tpu_custom_call.1} parent=1 // pred_region
      %57 = dma.done [#allocation3], 256
    $region25: #{tpu_custom_call.1} parent=1 // pred_fallthru
      _
    // Predicated region
    $region26: #{tpu_custom_call.1} parent=1 // pred_check
      _
    $region27: #{tpu_custom_call.1} parent=1 // pred_check_branch
      %59 = sbr.rel (0) target = $region29
    $region28: #{tpu_custom_call.1} parent=1 // pred_region
      %61 = dma.done [#allocation6], 4096
    $region29: #{tpu_custom_call.1} parent=1 // pred_fallthru
      _
    // Predicated region
    $region30: #{tpu_custom_call.1} parent=1 // pred_check
      _
    $region31: #{tpu_custom_call.1} parent=1 // pred_check_branch
      %63 = sbr.rel (0) target = $region33
    $region32: #{tpu_custom_call.1} parent=1 // pred_region
      %65 = dma.done [#allocation6], 4096
    $region33: #{tpu_custom_call.1} parent=1 // pred_fallthru
      _
    %v66 = vld [vmem:[#allocation2] sm:$0xff]
    %v67 = vld [vmem:[#allocation2 + $0x8] sm:$0xff]
    %v68 = vld [vmem:[#allocation5] sm:$0xff]
    %v69 = vld [vmem:[#allocation5 + $0x8] sm:$0xff]
    %v70 = vld [vmem:[#allocation5 + $0x10] sm:$0xff]
    %v71 = vld [vmem:[#allocation5 + $0x18] sm:$0xff]
    %v72 = vld [vmem:[#allocation5 + $0x20] sm:$0xff]
    %v73 = vld [vmem:[#allocation5 + $0x28] sm:$0xff]
    %v74 = vld [vmem:[#allocation5 + $0x30] sm:$0xff]
    %v75 = vld [vmem:[#allocation5 + $0x38] sm:$0xff]
    %v76 = vld [vmem:[#allocation5 + $0x40] sm:$0xff]
    %v77 = vld [vmem:[#allocation5 + $0x48] sm:$0xff]
    %v78 = vld [vmem:[#allocation5 + $0x50] sm:$0xff]
    %v79 = vld [vmem:[#allocation5 + $0x58] sm:$0xff]
    %v80 = vld [vmem:[#allocation5 + $0x60] sm:$0xff]
    %v81 = vld [vmem:[#allocation5 + $0x68] sm:$0xff]
    %v82 = vld [vmem:[#allocation5 + $0x70] sm:$0xff]
    %v83 = vld [vmem:[#allocation5 + $0x78] sm:$0xff]
    %v84 = vld [vmem:[#allocation5 + $0x80] sm:$0xff]
    %v85 = vld [vmem:[#allocation5 + $0x88] sm:$0xff]
    %v86 = vld [vmem:[#allocation5 + $0x90] sm:$0xff]
    %v87 = vld [vmem:[#allocation5 + $0x98] sm:$0xff]
    %v88 = vld [vmem:[#allocation5 + $0xa0] sm:$0xff]
    %v89 = vld [vmem:[#allocation5 + $0xa8] sm:$0xff]
    %v90 = vld [vmem:[#allocation5 + $0xb0] sm:$0xff]
    %v91 = vld [vmem:[#allocation5 + $0xb8] sm:$0xff]
    %v92 = vld [vmem:[#allocation5 + $0xc0] sm:$0xff]
    %v93 = vld [vmem:[#allocation5 + $0xc8] sm:$0xff]
    %v94 = vld [vmem:[#allocation5 + $0xd0] sm:$0xff]
    %v95 = vld [vmem:[#allocation5 + $0xd8] sm:$0xff]
    %v96 = vld [vmem:[#allocation5 + $0xe0] sm:$0xff]
    %v97 = vld [vmem:[#allocation5 + $0xe8] sm:$0xff]
    %v98 = vld [vmem:[#allocation5 + $0xf0] sm:$0xff]
    %v99 = vld [vmem:[#allocation5 + $0xf8] sm:$0xff]
    %v100 = vld [vmem:[%s2] sm:$0x1]
    %v102 = vperm.slane %v100, 0
    %104 = vmatpush.msra.mxu0 %v83
    %105 = vmatpush.msra.mxu0 %v82
    %106 = vmatpush.msra.mxu0 %v81
    %107 = vmatpush.msra.mxu0 %v80
    %108 = vmatpush.msra.mxu0 %v79
    %109 = vmatpush.msra.mxu0 %v78
    %110 = vmatpush.msra.mxu0 %v77
    %111 = vmatpush.msra.mxu0 %v76
    %112 = vmatpush.msra.mxu0 %v75
    %113 = vmatpush.msra.mxu0 %v74
    %114 = vmatpush.msra.mxu0 %v73
    %115 = vmatpush.msra.mxu0 %v72
    %116 = vmatpush.msra.mxu0 %v71
    %117 = vmatpush.msra.mxu0 %v70
    %118 = vmatpush.msra.mxu0 %v69
    %119 = vmatpush.msra.mxu0 %v68
    %120 = vmatmul.f32.gmra.mxu0 %v66
    %v121 = vpop.f32.mrf.mxu0
    %v122 = vadd.f32 %v102, %v121
    %123 = vdwg.mxu0
    %124 = vmatpush.msra.mxu0 %v99
    %125 = vmatpush.msra.mxu0 %v98
    %126 = vmatpush.msra.mxu0 %v97
    %127 = vmatpush.msra.mxu0 %v96
    %128 = vmatpush.msra.mxu0 %v95
    %129 = vmatpush.msra.mxu0 %v94
    %130 = vmatpush.msra.mxu0 %v93
    %131 = vmatpush.msra.mxu0 %v92
    %132 = vmatpush.msra.mxu0 %v91
    %133 = vmatpush.msra.mxu0 %v90
    %134 = vmatpush.msra.mxu0 %v89
    %135 = vmatpush.msra.mxu0 %v88
    %136 = vmatpush.msra.mxu0 %v87
    %137 = vmatpush.msra.mxu0 %v86
    %138 = vmatpush.msra.mxu0 %v85
    %139 = vmatpush.msra.mxu0 %v84
    %140 = vmatmul.f32.gmra.mxu0 %v67
    %v141 = vpop.f32.mrf.mxu0
    %v142 = vadd.f32 %v122, %v141
    %143 = vdwg.mxu0
    %v144 = vmax.f32 %v142, 0.0
    %v145 = vld [vmem:[#allocation7] sm:$0xff]
    %v146 = vld [vmem:[#allocation7 + $0x8] sm:$0xff]
    %v147 = vld [vmem:[#allocation7 + $0x10] sm:$0xff]
    %v148 = vld [vmem:[#allocation7 + $0x18] sm:$0xff]
    %v149 = vld [vmem:[#allocation7 + $0x20] sm:$0xff]
    %v150 = vld [vmem:[#allocation7 + $0x28] sm:$0xff]
    %v151 = vld [vmem:[#allocation7 + $0x30] sm:$0xff]
    %v152 = vld [vmem:[#allocation7 + $0x38] sm:$0xff]
    %v153 = vld [vmem:[#allocation7 + $0x40] sm:$0xff]
    %v154 = vld [vmem:[#allocation7 + $0x48] sm:$0xff]
    %v155 = vld [vmem:[#allocation7 + $0x50] sm:$0xff]
    %v156 = vld [vmem:[#allocation7 + $0x58] sm:$0xff]
    %v157 = vld [vmem:[#allocation7 + $0x60] sm:$0xff]
    %v158 = vld [vmem:[#allocation7 + $0x68] sm:$0xff]
    %v159 = vld [vmem:[#allocation7 + $0x70] sm:$0xff]
    %v160 = vld [vmem:[#allocation7 + $0x78] sm:$0xff]
    %v161 = vld [vmem:[#allocation7 + $0x80] sm:$0xff]
    %v162 = vld [vmem:[#allocation7 + $0x88] sm:$0xff]
    %v163 = vld [vmem:[#allocation7 + $0x90] sm:$0xff]
    %v164 = vld [vmem:[#allocation7 + $0x98] sm:$0xff]
    %v165 = vld [vmem:[#allocation7 + $0xa0] sm:$0xff]
    %v166 = vld [vmem:[#allocation7 + $0xa8] sm:$0xff]
    %v167 = vld [vmem:[#allocation7 + $0xb0] sm:$0xff]
    %v168 = vld [vmem:[#allocation7 + $0xb8] sm:$0xff]
    %v169 = vld [vmem:[#allocation7 + $0xc0] sm:$0xff]
    %v170 = vld [vmem:[#allocation7 + $0xc8] sm:$0xff]
    %v171 = vld [vmem:[#allocation7 + $0xd0] sm:$0xff]
    %v172 = vld [vmem:[#allocation7 + $0xd8] sm:$0xff]
    %v173 = vld [vmem:[#allocation7 + $0xe0] sm:$0xff]
    %v174 = vld [vmem:[#allocation7 + $0xe8] sm:$0xff]
    %v175 = vld [vmem:[#allocation7 + $0xf0] sm:$0xff]
    %v176 = vld [vmem:[#allocation7 + $0xf8] sm:$0xff]
    %v177 = vld [vmem:[%s4] sm:$0x3]
    %v179 = vperm.slane %v177, 0
    %v180 = vperm.slane %v177, 1
    %183 = vmatpush.msra.mxu0 %v175
    %184 = vmatpush.msra.mxu0 %v173
    %185 = vmatpush.msra.mxu0 %v171
    %186 = vmatpush.msra.mxu0 %v169
    %187 = vmatpush.msra.mxu0 %v167
    %188 = vmatpush.msra.mxu0 %v165
    %189 = vmatpush.msra.mxu0 %v163
    %190 = vmatpush.msra.mxu0 %v161
    %191 = vmatpush.msra.mxu0 %v159
    %192 = vmatpush.msra.mxu0 %v157
    %193 = vmatpush.msra.mxu0 %v155
    %194 = vmatpush.msra.mxu0 %v153
    %195 = vmatpush.msra.mxu0 %v151
    %196 = vmatpush.msra.mxu0 %v149
    %197 = vmatpush.msra.mxu0 %v147
    %198 = vmatpush.msra.mxu0 %v145
    %199 = vmatmul.f32.gmra.mxu0 %v144
    %v200 = vpop.f32.mrf.mxu0
    %v201 = vadd.f32 %v179, %v200
    %202 = vdwg.mxu0
    %203 = vmatpush.msra.mxu0 %v176
    %204 = vmatpush.msra.mxu0 %v174
    %205 = vmatpush.msra.mxu0 %v172
    %206 = vmatpush.msra.mxu0 %v170
    %207 = vmatpush.msra.mxu0 %v168
    %208 = vmatpush.msra.mxu0 %v166
    %209 = vmatpush.msra.mxu0 %v164
    %210 = vmatpush.msra.mxu0 %v162
    %211 = vmatpush.msra.mxu0 %v160
    %212 = vmatpush.msra.mxu0 %v158
    %213 = vmatpush.msra.mxu0 %v156
    %214 = vmatpush.msra.mxu0 %v154
    %215 = vmatpush.msra.mxu0 %v152
    %216 = vmatpush.msra.mxu0 %v150
    %217 = vmatpush.msra.mxu0 %v148
    %218 = vmatpush.msra.mxu0 %v146
    %219 = vmatmul.f32.gmra.mxu0 %v144
    %v220 = vpop.f32.mrf.mxu0
    %v221 = vadd.f32 %v180, %v220
    %222 = vdwg.mxu0
    %223 = vst [vmem:[#allocation8] sm:$0xff] %v201
    %224 = vst [vmem:[#allocation8 + $0x8] sm:$0xff] %v221
    // Predicated region
    $region34: #{tpu_custom_call.1} parent=1 // pred_check
      _
    $region35: #{tpu_custom_call.1} parent=1 // pred_check_branch
      %226 = sbr.rel (0) target = $region37
    $region36: #{tpu_custom_call.1} parent=1 // pred_region
      %228 = vsyncadd [#allocation4], 0
      %s230 = sshll.u32 [#allocation8], 4
      %s231 = int_to_ptr.vmem [resolvable:$true] %s230
      %s232 = sshll.u32 %s5, 4
      %s233 = int_to_ptr.hbm [resolvable:$true] %s232
      %235 = dma.vmem_to_hbm [thread:$0]  %s231, 256, %s233, [#allocation4]
    $region37: #{tpu_custom_call.1} parent=1 // pred_fallthru
      _
    // Predicated region
    $region38: #{tpu_custom_call.1} parent=1 // pred_check
      _
    $region39: #{tpu_custom_call.1} parent=1 // pred_check_branch
      %237 = sbr.rel (0) target = $region41
    $region40: #{tpu_custom_call.1} parent=1 // pred_region
      %239 = dma.done [#allocation4], 256
    $region41: #{tpu_custom_call.1} parent=1 // pred_fallthru
      _
    %240 = vsyncpa [#allocation3], 1
    %241 = vsyncpa [#allocation6], 1
    %242 = vsyncpa [#allocation4], 1

</llo_original>
